<compile_context>
chip_gen: v5e
topology: v5e:2x2
jax: 0.10.0
libtpu: 0.0.40
codegen_flags: <defaults>
</compile_context>

<pallas_src>
import functools

import jax
import jax.numpy as jnp
from jax.experimental import pallas as pl
from jax.experimental.pallas import tpu as pltpu


def _memdict_matmul_kernel(g_ref, w2_ref, out_ref):
    """One grid step: out[:, j*TM:(j+1)*TM] = gathered @ weight2[:, j*TM:(j+1)*TM].

    g_ref   : VMEM (N, D)   -- weight1[input_indices], resident across the grid
    w2_ref  : VMEM (D, TM)  -- streamed column tile of weight2
    out_ref : VMEM (N, TM)  -- output tile
    """
    out_ref[...] = jnp.dot(
        g_ref[...], w2_ref[...], preferred_element_type=jnp.float32
    ).astype(out_ref.dtype)


def _pick_tile(num_memory: int, tm: int) -> int:
    """Largest valid lane-dense tile width <= tm.

    Must be a multiple of 128 (lane constraint) that divides num_memory, or the
    full num_memory width.
    """
    tm = min(tm, num_memory)
    if tm == num_memory:
        return tm
    if num_memory % tm == 0 and tm % 128 == 0:
        return tm
    for t in range((tm // 128) * 128, 0, -128):
        if num_memory % t == 0:
            return t
    return num_memory


@functools.partial(jax.jit, static_argnames=("tm",))
def memory_dictionary_forward(input_indices, weight1, weight2, *, tm=512):
    """Pallas equivalent of MemoryDictionary.forward."""
    num_memory, num_dims = weight1.shape
    assert weight2.shape == (num_dims, num_memory)
    n = input_indices.shape[0]

    # Clamp indices: avoid silent out-of-bounds reads for bad indices.
    idx = jnp.clip(input_indices.astype(jnp.int32), 0, num_memory - 1)

    # Row gather (O(N*D)), done outside the pipelined grid so the column-tile
    # axis carries no cross-step dependency and can be megacore-parallel.
    gathered = jnp.take(weight1, idx, axis=0)

    tm = _pick_tile(num_memory, tm)
    grid = (num_memory // tm,)

    # VMEM budget: double-buffered gathered block + w2 tile + out tile, plus
    # headroom; capped at 64 MiB so it is safe on v7x as well as v5e/v6e.
    bpe = jnp.dtype(weight1.dtype).itemsize
    vmem_need = 2 * (n * num_dims + num_dims * tm + n * tm) * bpe
    vmem_limit = int(min(max(vmem_need + (8 << 20), 32 << 20), 64 << 20))

    return pl.pallas_call(
        _memdict_matmul_kernel,
        out_shape=jax.ShapeDtypeStruct((n, num_memory), weight1.dtype),
        grid=grid,
        in_specs=[
            # Gathered rows: same block index every step -> stays VMEM-resident.
            pl.BlockSpec((n, num_dims), lambda j: (0, 0)),
            # Streamed column tile of weight2.
            pl.BlockSpec((num_dims, tm), lambda j: (0, j)),
        ],
        out_specs=pl.BlockSpec((n, tm), lambda j: (0, j)),
        compiler_params=pltpu.CompilerParams(
            dimension_semantics=("parallel",),  # no cross-step dependency
            vmem_limit_bytes=vmem_limit,
        ),
    )(gathered, weight2)


if __name__ == "__main__":
    # Small, deterministic setup consistent with MemoryDictionary.__init__:
    #   weight1 ~ randn(num_memory, num_dims); weight2 = weight1.T (identity map)
    num_memory = 1024
    num_dims = 128
    n = 16

    key = jax.random.PRNGKey(0)
    k_w, k_i = jax.random.split(key)

    weight1 = jax.random.normal(k_w, (num_memory, num_dims), dtype=jnp.float32)
    weight2 = weight1.T  # identity-mapping initialization: weight1.T == weight2

    input_indices = jax.random.randint(k_i, (n,), 0, num_memory, dtype=jnp.int32)

    out = memory_dictionary_forward(input_indices, weight1, weight2)
    out = jax.block_until_ready(out)

    # Reference (plain JAX) check of the forward semantics.
    ref = jnp.take(weight1, input_indices, axis=0) @ weight2
    assert out.shape == (n, num_memory)
    assert out.dtype == jnp.float32
    assert jnp.allclose(out, ref, atol=1e-3, rtol=1e-3)

    print("KERNEL_OK")
</pallas_src>

<mosaic_0001>
module attributes {stable_mosaic.version = 11 : i64} {
  func.func @_memdict_matmul_kernel(%arg0: i32, %arg1: memref<16x128xf32, #tpu.memory_space<vmem>>, %arg2: memref<128x512xf32, #tpu.memory_space<vmem>>, %arg3: memref<16x512xf32, #tpu.memory_space<vmem>>) attributes {dimension_semantics = [#tpu.dimension_semantics<parallel>], iteration_bounds = array<i64: 2>, scalar_prefetch = 0 : i64, scratch_operands = 0 : i64, tpu.core_type = #tpu.core_type<tc>, window_params = [{pipeline_mode = #tpu.pipeline_mode<synchronous>, transform_indices = @transform_0, window_bounds = array<i64: 16, 128>}, {transform_indices = @transform_1, window_bounds = array<i64: 128, 512>}, {transform_indices = @transform_2, window_bounds = array<i64: 16, 512>}]} {
    %c0 = arith.constant 0 : index
    %c0_0 = arith.constant 0 : index
    %0 = vector.load %arg1[%c0, %c0_0] : memref<16x128xf32, #tpu.memory_space<vmem>>, vector<16x128xf32>
    %c0_1 = arith.constant 0 : index
    %c0_2 = arith.constant 0 : index
    %1 = vector.load %arg2[%c0_1, %c0_2] : memref<128x512xf32, #tpu.memory_space<vmem>>, vector<128x512xf32>
    %cst = arith.constant dense<0.000000e+00> : vector<16x512xf32>
    %2 = tpu.matmul %0, %1, %cst {dimension_numbers = #tpu.dot_dimension_numbers<[1], [0], [0], [1], [0, 0, 1, 1], [], []>} : vector<16x128xf32>, vector<128x512xf32>, vector<16x512xf32> -> vector<16x512xf32>
    %c0_3 = arith.constant 0 : index
    %c0_4 = arith.constant 0 : index
    %3 = vector.load %arg3[%c0_3, %c0_4] : memref<16x512xf32, #tpu.memory_space<vmem>>, vector<16x512xf32>
    tpu.vector_store %arg3[%c0_3, %c0_4], %2 {strides = array<i32>} : memref<16x512xf32, #tpu.memory_space<vmem>>, vector<16x512xf32>,
    return
  }
  func.func @transform_0(%arg0: i32) -> (i32, i32) {
    %c0_i32 = arith.constant 0 : i32
    %c0_i32_0 = arith.constant 0 : i32
    %c0_i32_1 = arith.constant 0 : i32
    return %c0_i32, %c0_i32_0 : i32, i32
  }
  func.func @transform_1(%arg0: i32) -> (i32, i32) {
    %c0_i32 = arith.constant 0 : i32
    %c0_i32_0 = arith.constant 0 : i32
    return %c0_i32, %arg0 : i32, i32
  }
  func.func @transform_2(%arg0: i32) -> (i32, i32) {
    %c0_i32 = arith.constant 0 : i32
    %c0_i32_0 = arith.constant 0 : i32
    return %c0_i32, %arg0 : i32, i32
  }
}

</mosaic_0001>

<llo_original>
// kernel: memory_dictionary_forward.1
$region0: #{memory_dictionary_forward.1}
  #allocation0 [shape = 'u32[]', space=smem, size = 0x4, offset = 0x4, fixed_abs, tag = 'smem constant byte address 0x4 - core index']
  #allocation1 [shape = 'u32[72,128]{1,0:T(1,128)}', space=vmem, size = 0x9000, scoped, tag = 'internal scratch']
  %s0 = inlined_call_operand.vmem [shape: f32[16,128], index: 0, kind: input, shape index: {}]
  %s1 = inlined_call_operand.hbm [shape: f32[128,1024], index: 1, kind: input, shape index: {}]
  %s2 = inlined_call_operand.hbm [shape: f32[16,1024], index: 2, kind: output, shape index: {}]
  %s3 = sld [smem:[#allocation0]]
  $region45: #{memory_dictionary_forward.1} parent=0
    _
  %s5 = ssub.s32 1, %s3
  %s6 = scalar_select 0, %s5, %s3
  $region1: #{memory_dictionary_forward.1} parent=0
    #allocation2 [shape = 'u8[524288]{0}', space=vmem, size = 0x80000, scoped, tag = 'input window, operand 1']
    #allocation3 [shape = 's32[2]{0}', space=sflag, size = 0x8, scoped, tag = 'scoped memory for memory_dictionary_forward.1']
    #allocation4 [shape = 's32[2]{0}', space=sflag, size = 0x8, scoped, tag = 'scoped memory for memory_dictionary_forward.1']
    #allocation5 [shape = 'u8[65536]{0}', space=vmem, size = 0x10000, scoped, tag = 'output window, operand 0']
    %7 = vsyncpa [#allocation3], 0
    %s8 = scalar_lea.sflag [#allocation3], 1
    %9 = vsyncpa %s8, 0
    %10 = vsyncpa [#allocation4], 0
    %s11 = scalar_lea.sflag [#allocation4], 1
    %12 = vsyncpa %s11, 0
    loop: start=0, step=1, limit=4
    $region2: #{memory_dictionary_forward.1} parent=1 // loop_pre_header
      _
    $region3: #{memory_dictionary_forward.1} parent=1 // loop_header
      %s14 = sphi 0, %s18
      %p15 = scmp.ge.s32.totalorder %s14, 4
      %s22 = sphi 0, %s22
      %s24 = sphi 0, %s22
      %s25 = sphi 0, %s24
      %s39 = sphi 0, %s25
      %s45 = sphi 0, %s47
      %s48 = sphi 0, %s45
      %s49 = sphi 0, %s48
      %s65 = sphi 0, %s49
      %s71 = sphi 0, %s73
      %s74 = sphi 0, %s71
      %s75 = sphi 0, %s74
      %s91 = sphi 0, %s75
    $region4: #{memory_dictionary_forward.1} parent=1 // loop_header_branch
      %17 = sbr.rel (%p15) target = $region8
    $region5: #{memory_dictionary_forward.1} parent=1 // loop_body
      %s19 = ssub.s32 %s14, 1
      %s20 = ssub.s32 %s14, 2
      %s21 = sadd.s32 %s14, 1
      %s23 = sadd.s32 %s22, 1
      %p26 = scmp.eq.s32.totalorder %s14, 1
      %p27 = scmp.ne.s32.totalorder %s22, %s24
      %p28 = scmp.eq.s32.totalorder %s14, 0
      %p29 = por %p27, %p28
      %p30 = scmp.ne.s32.totalorder %s22, %s24
      %p31 = scmp.eq.s32.totalorder %s19, 1
      %p32 = por %p30, %p31
      %p33 = scmp.ne.s32.totalorder %s24, %s25
      %p34 = scmp.eq.s32.totalorder %s19, 0
      %p35 = por %p33, %p34
      %p36 = scmp.ne.s32.totalorder %s24, %s25
      %p37 = scmp.eq.s32.totalorder %s20, 1
      %p38 = por %p36, %p37
      %p40 = scmp.ne.s32.totalorder %s25, %s39
      %p41 = scmp.eq.s32.totalorder %s20, 0
      %p42 = por %p40, %p41
      %s43 = ssub.s32 %s14, %s21
      %p44 = scmp.eq.s32.totalorder %s43, 0
      %s46 = sadd.s32 %s45, 1
      %s47 = scalar_select %p44, %s45, %s46
      %p50 = pneg %p44
      %p51 = scmp.eq.s32.totalorder %s14, 1
      %p52 = por %p50, %p51
      %p53 = scmp.ne.s32.totalorder %s45, %s48
      %p54 = scmp.eq.s32.totalorder %s14, 0
      %p55 = por %p53, %p54
      %p56 = scmp.ne.s32.totalorder %s45, %s48
      %p57 = scmp.eq.s32.totalorder %s19, 1
      %p58 = por %p56, %p57
      %p59 = scmp.ne.s32.totalorder %s48, %s49
      %p60 = scmp.eq.s32.totalorder %s19, 0
      %p61 = por %p59, %p60
      %p62 = scmp.ne.s32.totalorder %s48, %s49
      %p63 = scmp.eq.s32.totalorder %s20, 1
      %p64 = por %p62, %p63
      %p66 = scmp.ne.s32.totalorder %s49, %s65
      %p67 = scmp.eq.s32.totalorder %s20, 0
      %p68 = por %p66, %p67
      %s69 = ssub.s32 %s14, %s21
      %p70 = scmp.eq.s32.totalorder %s69, 0
      %s72 = sadd.s32 %s71, 1
      %s73 = scalar_select %p70, %s71, %s72
      %p76 = pneg %p70
      %p77 = scmp.eq.s32.totalorder %s14, 1
      %p78 = por %p76, %p77
      %p79 = scmp.ne.s32.totalorder %s71, %s74
      %p80 = scmp.eq.s32.totalorder %s14, 0
      %p81 = por %p79, %p80
      %p82 = scmp.ne.s32.totalorder %s71, %s74
      %p83 = scmp.eq.s32.totalorder %s19, 1
      %p84 = por %p82, %p83
      %p85 = scmp.ne.s32.totalorder %s74, %s75
      %p86 = scmp.eq.s32.totalorder %s19, 0
      %p87 = por %p85, %p86
      %p88 = scmp.ne.s32.totalorder %s74, %s75
      %p89 = scmp.eq.s32.totalorder %s20, 1
      %p90 = por %p88, %p89
      %p92 = scmp.ne.s32.totalorder %s75, %s91
      %p93 = scmp.eq.s32.totalorder %s20, 0
      %p94 = por %p92, %p93
      %p95 = scmp.le.s32.totalorder 1, %s14
      %p96 = scmp.lt.s32.totalorder %s14, 3
      %p97 = pnand %p95, %p96
      %p98 = pneg %p97
      // Predicated region
      $region9: #{memory_dictionary_forward.1} parent=5 // pred_check
        _
      $region10: #{memory_dictionary_forward.1} parent=5 // pred_check_branch
        %100 = sbr.rel (%p97) target = $region12
      $region11: #{memory_dictionary_forward.1} parent=5 // pred_region
        %s101 = ssub.s32 %s14, 1
        // Predicated region
        $region13: #{memory_dictionary_forward.1} parent=11 // pred_check
          %p102 = pneg %p35
        $region14: #{memory_dictionary_forward.1} parent=11 // pred_check_branch
          %104 = sbr.rel (%p102) target = $region16
        $region15: #{memory_dictionary_forward.1} parent=11 // pred_region
          _
        $region16: #{memory_dictionary_forward.1} parent=11 // pred_fallthru
          _
      $region12: #{memory_dictionary_forward.1} parent=5 // pred_fallthru
        _
      %p105 = scmp.lt.s32.totalorder %s14, 2
      // Predicated region
      $region17: #{memory_dictionary_forward.1} parent=5 // pred_check
        %p106 = pneg %p105
      $region18: #{memory_dictionary_forward.1} parent=5 // pred_check_branch
        %108 = sbr.rel (%p106) target = $region20
      $region19: #{memory_dictionary_forward.1} parent=5 // pred_region
        // Predicated region
        $region21: #{memory_dictionary_forward.1} parent=19 // pred_check
          %p109 = pneg %p55
        $region22: #{memory_dictionary_forward.1} parent=19 // pred_check_branch
          %111 = sbr.rel (%p109) target = $region24
        $region23: #{memory_dictionary_forward.1} parent=19 // pred_region
          %s112 = sand.u32 %s45, 1
          %s113 = scalar_lea.sflag [#allocation3], %s112
          %s114 = sand.u32 %s45, 1
          %s115 = smul.addr %s114, 512
          %s116 = scalar_lea.vmem [#allocation2], %s115
          %s117 = smul.u32 4, %s14
          %119 = vsyncadd %s113, 0
          %s120 = smul.addr %s117, 8
          %s121 = scalar_lea.hbm %s1, %s120
          %s122 = sshll.u32 %s121, 4
          %s123 = int_to_ptr.hbm [resolvable:$true] %s122
          %s124 = sshll.u32 %s116, 4
          %s125 = int_to_ptr.vmem [resolvable:$true] %s124
          %130 = dma.hbm_to_vmem [thread:$0]  %s123, 8192, %s125, %s113, 1024, 512, 32
        $region24: #{memory_dictionary_forward.1} parent=19 // pred_fallthru
          _
      $region20: #{memory_dictionary_forward.1} parent=5 // pred_fallthru
        _
      %p131 = scmp.le.s32.totalorder 1, %s14
      %p132 = scmp.lt.s32.totalorder %s14, 3
      %p133 = pnand %p131, %p132
      %p134 = pneg %p133
      // Predicated region
      $region25: #{memory_dictionary_forward.1} parent=5 // pred_check
        _
      $region26: #{memory_dictionary_forward.1} parent=5 // pred_check_branch
        %136 = sbr.rel (%p133) target = $region28
      $region27: #{memory_dictionary_forward.1} parent=5 // pred_region
        %s137 = ssub.s32 %s14, 1
        %s138 = sand.u32 %s48, 1
        %s139 = scalar_lea.sflag [#allocation3], %s138
        %s140 = sand.u32 %s48, 1
        %s141 = smul.addr %s140, 512
        %s142 = scalar_lea.vmem [#allocation2], %s141
        // Predicated region
        $region29: #{memory_dictionary_forward.1} parent=27 // pred_check
          %p143 = pneg %p61
        $region30: #{memory_dictionary_forward.1} parent=27 // pred_check_branch
          %145 = sbr.rel (%p143) target = $region32
        $region31: #{memory_dictionary_forward.1} parent=27 // pred_region
          %147 = dma.done %s139, 8192
        $region32: #{memory_dictionary_forward.1} parent=27 // pred_fallthru
          _
        %p148 = pneg %p35
        %p149 = pneg %p32
        %s150 = sand.u32 %s48, 1
        %s151 = scalar_lea.sflag [#allocation3], %s150
        %s152 = sand.u32 %s48, 1
        %s153 = smul.addr %s152, 512
        %s154 = scalar_lea.vmem [#allocation2], %s153
        %p155 = pneg %p61
        %p156 = pneg %p58
        %p157 = pneg %p87
        %p158 = pneg %p84
        %s159 = sand.u32 %s74, 1
        %s160 = scalar_lea.sflag [#allocation4], %s159
        %s161 = sand.u32 %s74, 1
        %s162 = smul.addr %s161, 64
        %s163 = scalar_lea.vmem [#allocation5], %s162
        %s164 = smul.u32 4, %s19
        %s165 = smul.u32 4, %s19
        %v166 = vld [vmem:[%s0] sm:$0xff]
        %v167 = vld [vmem:[%s0 + $0x8] sm:$0xff]
        %v168 = vld [vmem:[%s142] sm:$0xff]
        %v169 = vld [vmem:[%s142 + $0x8] sm:$0xff]
        %v170 = vld [vmem:[%s142 + $0x10] sm:$0xff]
        %v171 = vld [vmem:[%s142 + $0x18] sm:$0xff]
        %v172 = vld [vmem:[%s142 + $0x20] sm:$0xff]
        %v173 = vld [vmem:[%s142 + $0x28] sm:$0xff]
        %v174 = vld [vmem:[%s142 + $0x30] sm:$0xff]
        %v175 = vld [vmem:[%s142 + $0x38] sm:$0xff]
        %v176 = vld [vmem:[%s142 + $0x40] sm:$0xff]
        %v177 = vld [vmem:[%s142 + $0x48] sm:$0xff]
        %v178 = vld [vmem:[%s142 + $0x50] sm:$0xff]
        %v179 = vld [vmem:[%s142 + $0x58] sm:$0xff]
        %v180 = vld [vmem:[%s142 + $0x60] sm:$0xff]
        %v181 = vld [vmem:[%s142 + $0x68] sm:$0xff]
        %v182 = vld [vmem:[%s142 + $0x70] sm:$0xff]
        %v183 = vld [vmem:[%s142 + $0x78] sm:$0xff]
        %v184 = vld [vmem:[%s142 + $0x80] sm:$0xff]
        %v185 = vld [vmem:[%s142 + $0x88] sm:$0xff]
        %v186 = vld [vmem:[%s142 + $0x90] sm:$0xff]
        %v187 = vld [vmem:[%s142 + $0x98] sm:$0xff]
        %v188 = vld [vmem:[%s142 + $0xa0] sm:$0xff]
        %v189 = vld [vmem:[%s142 + $0xa8] sm:$0xff]
        %v190 = vld [vmem:[%s142 + $0xb0] sm:$0xff]
        %v191 = vld [vmem:[%s142 + $0xb8] sm:$0xff]
        %v192 = vld [vmem:[%s142 + $0xc0] sm:$0xff]
        %v193 = vld [vmem:[%s142 + $0xc8] sm:$0xff]
        %v194 = vld [vmem:[%s142 + $0xd0] sm:$0xff]
        %v195 = vld [vmem:[%s142 + $0xd8] sm:$0xff]
        %v196 = vld [vmem:[%s142 + $0xe0] sm:$0xff]
        %v197 = vld [vmem:[%s142 + $0xe8] sm:$0xff]
        %v198 = vld [vmem:[%s142 + $0xf0] sm:$0xff]
        %v199 = vld [vmem:[%s142 + $0xf8] sm:$0xff]
        %v200 = vld [vmem:[%s142 + $0x100] sm:$0xff]
        %v201 = vld [vmem:[%s142 + $0x108] sm:$0xff]
        %v202 = vld [vmem:[%s142 + $0x110] sm:$0xff]
        %v203 = vld [vmem:[%s142 + $0x118] sm:$0xff]
        %v204 = vld [vmem:[%s142 + $0x120] sm:$0xff]
        %v205 = vld [vmem:[%s142 + $0x128] sm:$0xff]
        %v206 = vld [vmem:[%s142 + $0x130] sm:$0xff]
        %v207 = vld [vmem:[%s142 + $0x138] sm:$0xff]
        %v208 = vld [vmem:[%s142 + $0x140] sm:$0xff]
        %v209 = vld [vmem:[%s142 + $0x148] sm:$0xff]
        %v210 = vld [vmem:[%s142 + $0x150] sm:$0xff]
        %v211 = vld [vmem:[%s142 + $0x158] sm:$0xff]
        %v212 = vld [vmem:[%s142 + $0x160] sm:$0xff]
        %v213 = vld [vmem:[%s142 + $0x168] sm:$0xff]
        %v214 = vld [vmem:[%s142 + $0x170] sm:$0xff]
        %v215 = vld [vmem:[%s142 + $0x178] sm:$0xff]
        %v216 = vld [vmem:[%s142 + $0x180] sm:$0xff]
        %v217 = vld [vmem:[%s142 + $0x188] sm:$0xff]
        %v218 = vld [vmem:[%s142 + $0x190] sm:$0xff]
        %v219 = vld [vmem:[%s142 + $0x198] sm:$0xff]
        %v220 = vld [vmem:[%s142 + $0x1a0] sm:$0xff]
        %v221 = vld [vmem:[%s142 + $0x1a8] sm:$0xff]
        %v222 = vld [vmem:[%s142 + $0x1b0] sm:$0xff]
        %v223 = vld [vmem:[%s142 + $0x1b8] sm:$0xff]
        %v224 = vld [vmem:[%s142 + $0x1c0] sm:$0xff]
        %v225 = vld [vmem:[%s142 + $0x1c8] sm:$0xff]
        %v226 = vld [vmem:[%s142 + $0x1d0] sm:$0xff]
        %v227 = vld [vmem:[%s142 + $0x1d8] sm:$0xff]
        %v228 = vld [vmem:[%s142 + $0x1e0] sm:$0xff]
        %v229 = vld [vmem:[%s142 + $0x1e8] sm:$0xff]
        %v230 = vld [vmem:[%s142 + $0x1f0] sm:$0xff]
        %v231 = vld [vmem:[%s142 + $0x1f8] sm:$0xff]
        %232 = vmatpush.msra.mxu0 %v228
        %233 = vmatpush.msra.mxu0 %v224
        %234 = vmatpush.msra.mxu0 %v220
        %235 = vmatpush.msra.mxu0 %v216
        %236 = vmatpush.msra.mxu0 %v212
        %237 = vmatpush.msra.mxu0 %v208
        %238 = vmatpush.msra.mxu0 %v204
        %239 = vmatpush.msra.mxu0 %v200
        %240 = vmatpush.msra.mxu0 %v196
        %241 = vmatpush.msra.mxu0 %v192
        %242 = vmatpush.msra.mxu0 %v188
        %243 = vmatpush.msra.mxu0 %v184
        %244 = vmatpush.msra.mxu0 %v180
        %245 = vmatpush.msra.mxu0 %v176
        %246 = vmatpush.msra.mxu0 %v172
        %247 = vmatpush.msra.mxu0 %v168
        %248 = vmatmul.f32.gmra.mxu0 %v166
        %v249 = vpop.f32.mrf.mxu0
        %v250 = vadd.f32 0.0, %v249
        %251 = vmatmul.f32.gmra.mxu0 %v167
        %v252 = vpop.f32.mrf.mxu0
        %v253 = vadd.f32 0.0, %v252
        %254 = vdwg.mxu0
        %255 = vmatpush.msra.mxu0 %v229
        %256 = vmatpush.msra.mxu0 %v225
        %257 = vmatpush.msra.mxu0 %v221
        %258 = vmatpush.msra.mxu0 %v217
        %259 = vmatpush.msra.mxu0 %v213
        %260 = vmatpush.msra.mxu0 %v209
        %261 = vmatpush.msra.mxu0 %v205
        %262 = vmatpush.msra.mxu0 %v201
        %263 = vmatpush.msra.mxu0 %v197
        %264 = vmatpush.msra.mxu0 %v193
        %265 = vmatpush.msra.mxu0 %v189
        %266 = vmatpush.msra.mxu0 %v185
        %267 = vmatpush.msra.mxu0 %v181
        %268 = vmatpush.msra.mxu0 %v177
        %269 = vmatpush.msra.mxu0 %v173
        %270 = vmatpush.msra.mxu0 %v169
        %271 = vmatmul.f32.gmra.mxu0 %v166
        %v272 = vpop.f32.mrf.mxu0
        %v273 = vadd.f32 0.0, %v272
        %274 = vmatmul.f32.gmra.mxu0 %v167
        %v275 = vpop.f32.mrf.mxu0
        %v276 = vadd.f32 0.0, %v275
        %277 = vdwg.mxu0
        %278 = vmatpush.msra.mxu0 %v230
        %279 = vmatpush.msra.mxu0 %v226
        %280 = vmatpush.msra.mxu0 %v222
        %281 = vmatpush.msra.mxu0 %v218
        %282 = vmatpush.msra.mxu0 %v214
        %283 = vmatpush.msra.mxu0 %v210
        %284 = vmatpush.msra.mxu0 %v206
        %285 = vmatpush.msra.mxu0 %v202
        %286 = vmatpush.msra.mxu0 %v198
        %287 = vmatpush.msra.mxu0 %v194
        %288 = vmatpush.msra.mxu0 %v190
        %289 = vmatpush.msra.mxu0 %v186
        %290 = vmatpush.msra.mxu0 %v182
        %291 = vmatpush.msra.mxu0 %v178
        %292 = vmatpush.msra.mxu0 %v174
        %293 = vmatpush.msra.mxu0 %v170
        %294 = vmatmul.f32.gmra.mxu0 %v166
        %v295 = vpop.f32.mrf.mxu0
        %v296 = vadd.f32 0.0, %v295
        %297 = vmatmul.f32.gmra.mxu0 %v167
        %v298 = vpop.f32.mrf.mxu0
        %v299 = vadd.f32 0.0, %v298
        %300 = vdwg.mxu0
        %301 = vmatpush.msra.mxu0 %v231
        %302 = vmatpush.msra.mxu0 %v227
        %303 = vmatpush.msra.mxu0 %v223
        %304 = vmatpush.msra.mxu0 %v219
        %305 = vmatpush.msra.mxu0 %v215
        %306 = vmatpush.msra.mxu0 %v211
        %307 = vmatpush.msra.mxu0 %v207
        %308 = vmatpush.msra.mxu0 %v203
        %309 = vmatpush.msra.mxu0 %v199
        %310 = vmatpush.msra.mxu0 %v195
        %311 = vmatpush.msra.mxu0 %v191
        %312 = vmatpush.msra.mxu0 %v187
        %313 = vmatpush.msra.mxu0 %v183
        %314 = vmatpush.msra.mxu0 %v179
        %315 = vmatpush.msra.mxu0 %v175
        %316 = vmatpush.msra.mxu0 %v171
        %317 = vmatmul.f32.gmra.mxu0 %v166
        %v318 = vpop.f32.mrf.mxu0
        %v319 = vadd.f32 0.0, %v318
        %320 = vmatmul.f32.gmra.mxu0 %v167
        %v321 = vpop.f32.mrf.mxu0
        %v322 = vadd.f32 0.0, %v321
        %323 = vdwg.mxu0
        %324 = vst [vmem:[%s163] sm:$0xff] %v250
        %325 = vst [vmem:[%s163 + $0x8] sm:$0xff] %v273
        %326 = vst [vmem:[%s163 + $0x10] sm:$0xff] %v296
        %327 = vst [vmem:[%s163 + $0x18] sm:$0xff] %v319
        %328 = vst [vmem:[%s163 + $0x20] sm:$0xff] %v253
        %329 = vst [vmem:[%s163 + $0x28] sm:$0xff] %v276
        %330 = vst [vmem:[%s163 + $0x30] sm:$0xff] %v299
        %331 = vst [vmem:[%s163 + $0x38] sm:$0xff] %v322
        %s332 = sand.u32 %s74, 1
        %s333 = scalar_lea.sflag [#allocation4], %s332
        %s334 = sand.u32 %s74, 1
        %s335 = smul.addr %s334, 64
        %s336 = scalar_lea.vmem [#allocation5], %s335
        // Predicated region
        $region33: #{memory_dictionary_forward.1} parent=27 // pred_check
          %p337 = pneg %p84
        $region34: #{memory_dictionary_forward.1} parent=27 // pred_check_branch
          %339 = sbr.rel (%p337) target = $region36
        $region35: #{memory_dictionary_forward.1} parent=27 // pred_region
          %s340 = smul.u32 4, %s19
          %342 = vsyncadd %s333, 0
          %s343 = smul.addr %s340, 8
          %s344 = scalar_lea.hbm %s2, %s343
          %s345 = sshll.u32 %s336, 4
          %s346 = int_to_ptr.vmem [resolvable:$true] %s345
          %s347 = sshll.u32 %s344, 4
          %s348 = int_to_ptr.hbm [resolvable:$true] %s347
          %353 = dma.vmem_to_hbm [thread:$0]  %s346, 1024, %s348, %s333, 512, 1024, 32
        $region36: #{memory_dictionary_forward.1} parent=27 // pred_fallthru
          _
      $region28: #{memory_dictionary_forward.1} parent=5 // pred_fallthru
        _
      %p354 = scmp.le.s32.totalorder 2, %s14
      // Predicated region
      $region37: #{memory_dictionary_forward.1} parent=5 // pred_check
        %p355 = pneg %p354
      $region38: #{memory_dictionary_forward.1} parent=5 // pred_check_branch
        %357 = sbr.rel (%p355) target = $region40
      $region39: #{memory_dictionary_forward.1} parent=5 // pred_region
        %s358 = ssub.s32 %s14, 2
        // Predicated region
        $region41: #{memory_dictionary_forward.1} parent=39 // pred_check
          %p359 = pneg %p90
        $region42: #{memory_dictionary_forward.1} parent=39 // pred_check_branch
          %361 = sbr.rel (%p359) target = $region44
        $region43: #{memory_dictionary_forward.1} parent=39 // pred_region
          %s362 = sand.u32 %s75, 1
          %s363 = scalar_lea.sflag [#allocation4], %s362
          %s364 = sand.u32 %s75, 1
          %s365 = smul.addr %s364, 64
          %s366 = scalar_lea.vmem [#allocation5], %s365
          %368 = dma.done %s363, 1024
        $region44: #{memory_dictionary_forward.1} parent=39 // pred_fallthru
          _
      $region40: #{memory_dictionary_forward.1} parent=5 // pred_fallthru
        _
    $region6: #{memory_dictionary_forward.1} parent=1 // loop_footer
      %s18 = sadd.s32 1, %s14
    $region7: #{memory_dictionary_forward.1} parent=1 // loop_footer_branch
      %13 = sbr.rel target = $region3
    $region8: #{memory_dictionary_forward.1} parent=1 // loop_exit
      _
    %369 = vsyncpa [#allocation3], 1
    %s370 = scalar_lea.sflag [#allocation3], 1
    %371 = vsyncpa %s370, 1
    %372 = vsyncpa [#allocation4], 1
    %s373 = scalar_lea.sflag [#allocation4], 1
    %374 = vsyncpa %s373, 1

</llo_original>
